<compile_context>
chip_gen: v7x
topology: tpu7x:2x2x1
jax: 0.10.0
libtpu: 0.0.40
codegen_flags: <defaults>
</compile_context>

<pallas_src>
import math

import jax
import jax.numpy as jnp
from jax import lax
from jax.experimental import pallas as pl
from jax.experimental.pallas import tpu as pltpu


def _pick_vmem_limit_bytes():
    """Scoped-VMEM limit tuned per generation (~3/4 of physical, capped)."""
    try:
        cap = int(pltpu.get_tpu_info().vmem_capacity_bytes)
    except Exception:
        cap = 64 * 1024 * 1024  # conservative fallback
    return int(max(32 * 1024 * 1024, min(cap * 3 // 4, 96 * 1024 * 1024)))


def graph_convolution(x, adj, weight, gamma, beta, bias, *, eps=1e-5,
                      mxu_dtype=jnp.float32, force_two_pass=False):
    """Forward pass of GraphConvolution.

    x:      (B, F_in, N) float32
    adj:    (B, N, N)    float32
    weight: (F_in, F_out)
    gamma, beta, bias: (F_out,)   (BatchNorm affine params and GCN bias)
    Returns (B, F_out, N) float32.
    """
    B, F_in, N = x.shape
    F_out = weight.shape[1]
    if N != F_out:
        # nn.BatchNorm1d(out_features) on a (B, N, F_out) tensor only runs if
        # the channel dim (N) equals out_features.
        raise ValueError("GraphConvolution requires N == out_features (BatchNorm1d).")

    vmem_limit = _pick_vmem_limit_bytes()
    mxu_bytes = jnp.dtype(mxu_dtype).itemsize

    # --- wrapper-side layout plumbing (cheap, done once by XLA) --------------
    n_pad = (-N) % 128
    N_pad = N + n_pad                                     # lane-dense trailing axis

    # Batch tile: cap the adj block at ~2 MiB and the static unroll at 8.
    TILE_B = int(max(1, min(8, B,
                            (2 * 1024 * 1024) // max(N_pad * N_pad * mxu_bytes, 1))))
    B_pad = ((B + TILE_B - 1) // TILE_B) * TILE_B
    num_tiles = B_pad // TILE_B

    # x: (B, F_in, N) -> (F_in, B_pad*N_pad): the support matmul becomes a
    # single lane-dense 2-D dot (F_out,F_in) x (F_in, TILE_B*N_pad) per step.
    x_p = jnp.pad(x.astype(jnp.float32), ((0, B_pad - B), (0, 0), (0, n_pad)))
    x2d = jnp.transpose(x_p, (1, 0, 2)).reshape(F_in, B_pad * N_pad).astype(mxu_dtype)

    # adj pre-transposed per batch so the second dot is a canonical (M,K)x(K,N)
    # contraction (no in-kernel transpose / XLU relayout).  Zero-padded batches
    # and lanes contribute exactly zero to conv and the BN statistics.
    adj_t = jnp.pad(jnp.swapaxes(adj.astype(jnp.float32), 1, 2),
                    ((0, B_pad - B), (0, n_pad), (0, n_pad))).astype(mxu_dtype)

    w_t = jnp.transpose(weight).astype(mxu_dtype)                   # (F_out, F_in)
    gamma2 = jnp.pad(gamma.astype(jnp.float32).reshape(1, N),
                     ((0, 0), (0, n_pad)))                          # (1, N_pad)
    beta2 = jnp.pad(beta.astype(jnp.float32).reshape(1, N),
                    ((0, 0), (0, n_pad)))                           # (1, N_pad)
    bias2 = bias.astype(jnp.float32).reshape(F_out, 1)              # (F_out, 1)

    inv_count = 1.0 / float(B * F_out)      # biased (training-mode) statistics

    out_bytes = B_pad * F_out * N_pad * 4
    x_blk_bytes = F_in * TILE_B * N_pad * mxu_bytes
    adj_blk_bytes = TILE_B * N_pad * N_pad * mxu_bytes
    fused_ok = (not force_two_pass) and (
        3 * out_bytes + 2 * (x_blk_bytes + adj_blk_bytes) + 2 * 1024 * 1024
        <= vmem_limit)

    if fused_ok:
        # =====================================================================
        # Fused single-pass: conv stays VMEM-resident as the output block;
        # exact two-pass BN stats + scale/shift/bias applied in the finalize.
        # =====================================================================
        def fused_kernel(x_ref, adj_ref, w_ref, g_ref, be_ref, bi_ref, out_ref):
            i = pl.program_id(0)
            base = i * TILE_B

            # support[o, b*N_pad+n] = sum_f W[f,o] * x[b,f,n]  (one 2-D MXU dot)
            support = jnp.dot(w_ref[...], x_ref[...],
                              preferred_element_type=jnp.float32)
            support = support.astype(mxu_dtype)

            for t in range(TILE_B):                       # small static unroll
                sup_t = support[:, t * N_pad:(t + 1) * N_pad]      # (F_out, N_pad)
                conv_t = jnp.dot(sup_t, adj_ref[t],
                                 preferred_element_type=jnp.float32)
                out_ref[base + t] = conv_t

            @pl.when(i == pl.num_programs(0) - 1)
            def _finalize():
                data = out_ref[...]                       # (B_pad, F_out, N_pad)
                # exact (two-pass) BatchNorm1d training statistics per lane n
                sum_f = jnp.sum(data, axis=0)                       # (F_out, N_pad)
                mean = jnp.sum(sum_f, axis=0, keepdims=True) * inv_count
                mean3 = mean.reshape(1, 1, N_pad)
                if B_pad == B:
                    d = data - mean3
                else:
                    bidx = lax.broadcasted_iota(jnp.int32, data.shape, 0)
                    d = jnp.where(bidx < B, data - mean3, 0.0)
                var = (jnp.sum(jnp.sum(d * d, axis=0), axis=0, keepdims=True)
                       * inv_count)                                 # (1, N_pad)
                scale = g_ref[...] * lax.rsqrt(var + eps)           # (1, N_pad)
                shift = be_ref[...] - mean * scale                  # (1, N_pad)
                out_ref[...] = (data * scale.reshape(1, 1, N_pad)
                                + shift.reshape(1, 1, N_pad)
                                + bi_ref[...].reshape(1, F_out, 1))

        out_p = pl.pallas_call(
            fused_kernel,
            out_shape=jax.ShapeDtypeStruct((B_pad, F_out, N_pad), jnp.float32),
            grid_spec=pltpu.PrefetchScalarGridSpec(
                num_scalar_prefetch=0,
                grid=(num_tiles,),
                in_specs=[
                    pl.BlockSpec((F_in, TILE_B * N_pad), lambda i: (0, i)),
                    pl.BlockSpec((TILE_B, N_pad, N_pad), lambda i: (i, 0, 0)),
                    pl.BlockSpec((F_out, F_in), lambda i: (0, 0)),
                    pl.BlockSpec((1, N_pad), lambda i: (0, 0)),
                    pl.BlockSpec((1, N_pad), lambda i: (0, 0)),
                    pl.BlockSpec((F_out, 1), lambda i: (0, 0)),
                ],
                out_specs=pl.BlockSpec((B_pad, F_out, N_pad), lambda i: (0, 0, 0)),
            ),
            compiler_params=pltpu.CompilerParams(
                dimension_semantics=("arbitrary",),   # resident output + finalize
                vmem_limit_bytes=vmem_limit,
            ),
        )(x2d, adj_t, w_t, gamma2, beta2, bias2)

        return out_p[:B, :, :N]

    # =========================================================================
    # Two-pass fallback for problems whose conv tensor does not fit in VMEM.
    # Pass 1: conv in (F_out, N_pad) layout + streaming BN stats.
    # Pass 2: fused scale/shift/bias apply, aliased over the conv buffer.
    # =========================================================================
    def conv_stats_kernel(x_ref, adj_ref, w_ref, g_ref, be_ref,
                          conv_ref, scale_ref, shift_ref,
                          sum_ref, sq_ref):
        i = pl.program_id(0)

        @pl.when(i == 0)
        def _init():
            sum_ref[...] = jnp.zeros_like(sum_ref)
            sq_ref[...] = jnp.zeros_like(sq_ref)

        support = jnp.dot(w_ref[...], x_ref[...],
                          preferred_element_type=jnp.float32).astype(mxu_dtype)
        for t in range(TILE_B):                           # small static unroll
            sup_t = support[:, t * N_pad:(t + 1) * N_pad]
            conv_t = jnp.dot(sup_t, adj_ref[t],
                             preferred_element_type=jnp.float32)   # (F_out, N_pad)
            conv_ref[t] = conv_t
            sum_ref[...] += conv_t
            sq_ref[...] += conv_t * conv_t

        @pl.when(i == pl.num_programs(0) - 1)
        def _finalize():
            # TODO(synk): streaming E[x^2]-E[x]^2 can cancel for far-from-zero
            # data; switch to Welford / mean-shifted accumulation if needed.
            mean = jnp.sum(sum_ref[...], axis=0, keepdims=True) * inv_count
            ex2 = jnp.sum(sq_ref[...], axis=0, keepdims=True) * inv_count
            var = ex2 - mean * mean
            scale = g_ref[...] * lax.rsqrt(var + eps)               # (1, N_pad)
            scale_ref[...] = scale
            shift_ref[...] = be_ref[...] - mean * scale             # (1, N_pad)

    conv_out, scale_out, shift_out = pl.pallas_call(
        conv_stats_kernel,
        out_shape=(
            jax.ShapeDtypeStruct((B_pad, F_out, N_pad), jnp.float32),
            jax.ShapeDtypeStruct((1, N_pad), jnp.float32),
            jax.ShapeDtypeStruct((1, N_pad), jnp.float32),
        ),
        grid_spec=pltpu.PrefetchScalarGridSpec(
            num_scalar_prefetch=0,
            grid=(num_tiles,),
            in_specs=[
                pl.BlockSpec((F_in, TILE_B * N_pad), lambda i: (0, i)),
                pl.BlockSpec((TILE_B, N_pad, N_pad), lambda i: (i, 0, 0)),
                pl.BlockSpec((F_out, F_in), lambda i: (0, 0)),
                pl.BlockSpec((1, N_pad), lambda i: (0, 0)),
                pl.BlockSpec((1, N_pad), lambda i: (0, 0)),
            ],
            out_specs=(
                pl.BlockSpec((TILE_B, F_out, N_pad), lambda i: (i, 0, 0)),
                pl.BlockSpec((1, N_pad), lambda i: (0, 0)),
                pl.BlockSpec((1, N_pad), lambda i: (0, 0)),
            ),
            scratch_shapes=[
                pltpu.VMEM((F_out, N_pad), jnp.float32),   # running sum
                pltpu.VMEM((F_out, N_pad), jnp.float32),   # running sum of squares
            ],
        ),
        compiler_params=pltpu.CompilerParams(
            dimension_semantics=("arbitrary",),   # stats accumulate over batch
            vmem_limit_bytes=vmem_limit,
        ),
    )(x2d, adj_t, w_t, gamma2, beta2)

    def bn_apply_kernel(conv_ref, scale_ref, shift_ref, bias_ref, out_ref):
        out_ref[...] = (conv_ref[...] * scale_ref[...].reshape(1, 1, N_pad)
                        + (shift_ref[...].reshape(1, 1, N_pad)
                           + bias_ref[...].reshape(1, F_out, 1)))

    out_p = pl.pallas_call(
        bn_apply_kernel,
        out_shape=jax.ShapeDtypeStruct((B_pad, F_out, N_pad), jnp.float32),
        grid_spec=pltpu.PrefetchScalarGridSpec(
            num_scalar_prefetch=0,
            grid=(num_tiles,),
            in_specs=[
                pl.BlockSpec((TILE_B, F_out, N_pad), lambda i: (i, 0, 0)),
                pl.BlockSpec((1, N_pad), lambda i: (0, 0)),
                pl.BlockSpec((1, N_pad), lambda i: (0, 0)),
                pl.BlockSpec((F_out, 1), lambda i: (0, 0)),
            ],
            out_specs=pl.BlockSpec((TILE_B, F_out, N_pad), lambda i: (i, 0, 0)),
        ),
        input_output_aliases={0: 0},   # write BN output over conv_out buffer
        compiler_params=pltpu.CompilerParams(
            dimension_semantics=("parallel",),
            vmem_limit_bytes=vmem_limit,
        ),
    )(conv_out, scale_out, shift_out, bias2)

    return out_p[:B, :, :N]


def init_params(key, in_features, out_features):
    # xavier_normal_ with gain=0.02
    std = 0.02 * math.sqrt(2.0 / (in_features + out_features))
    w = std * jax.random.normal(key, (in_features, out_features), jnp.float32)
    bias = jnp.zeros((out_features,), jnp.float32)      # init.constant_(0.0)
    gamma = jnp.ones((out_features,), jnp.float32)      # BatchNorm1d default weight
    beta = jnp.zeros((out_features,), jnp.float32)      # BatchNorm1d default bias
    return w, gamma, beta, bias


if __name__ == "__main__":
    B = 2
    in_features = 16
    out_features = 8
    N = out_features  # required by BatchNorm1d(out_features) on the (B, N, F_out) tensor

    key = jax.random.PRNGKey(0)
    kx, kadj, kw = jax.random.split(key, 3)

    x = jax.random.normal(kx, (B, in_features, N), jnp.float32)
    adj = jax.random.uniform(kadj, (B, N, N), jnp.float32)
    # row-normalize the adjacency (typical GCN input; any values are valid)
    adj = adj / jnp.sum(adj, axis=-1, keepdims=True)

    w, gamma, beta, bias = init_params(kw, in_features, out_features)

    # pure-JAX reference (mirrors the PyTorch forward exactly)
    xt = jnp.transpose(x, (0, 2, 1))
    support = jnp.einsum("bnf,fo->bno", xt, w)
    conv = jnp.einsum("bnm,bmo->bno", adj, support)
    mean = jnp.mean(conv, axis=(0, 2), keepdims=True)
    var = jnp.mean((conv - mean) ** 2, axis=(0, 2), keepdims=True)
    bn = (conv - mean) / jnp.sqrt(var + 1e-5) * gamma.reshape(1, -1, 1) + beta.reshape(1, -1, 1)
    ref = jnp.transpose(bn + bias, (0, 2, 1))

    # fused single-pass fast path (taken automatically at this scale)
    out_fused = graph_convolution(x, adj, w, gamma, beta, bias)
    jax.block_until_ready(out_fused)
    assert out_fused.shape == (B, out_features, N)
    err_f = float(jnp.max(jnp.abs(out_fused - ref)))
    assert jnp.allclose(out_fused, ref, atol=2e-4, rtol=2e-4), f"fused max abs err {err_f}"

    # two-pass (large-problem) fallback path, exercised explicitly for coverage
    out_2p = graph_convolution(x, adj, w, gamma, beta, bias, force_two_pass=True)
    jax.block_until_ready(out_2p)
    err_2 = float(jnp.max(jnp.abs(out_2p - ref)))
    assert jnp.allclose(out_2p, ref, atol=2e-4, rtol=2e-4), f"two-pass max abs err {err_2}"

    print("KERNEL_OK")
</pallas_src>

<mosaic_0001>
module attributes {stable_mosaic.version = 11 : i64} {
  func.func @fused_kernel(%arg0: i32, %arg1: memref<16x256xf32, #tpu.memory_space<vmem>>, %arg2: memref<2x128x128xf32, #tpu.memory_space<vmem>>, %arg3: memref<8x16xf32, #tpu.memory_space<vmem>>, %arg4: memref<1x128xf32, #tpu.memory_space<vmem>>, %arg5: memref<1x128xf32, #tpu.memory_space<vmem>>, %arg6: memref<8x1xf32, #tpu.memory_space<vmem>>, %arg7: memref<2x8x128xf32, #tpu.memory_space<vmem>>) attributes {dimension_semantics = [#tpu.dimension_semantics<arbitrary>], iteration_bounds = array<i64: 1>, scalar_prefetch = 0 : i64, scratch_operands = 0 : i64, tpu.core_type = #tpu.core_type<tc>, window_params = [{transform_indices = @transform_0, window_bounds = array<i64: 16, 256>}, {transform_indices = @transform_1, window_bounds = array<i64: 2, 128, 128>}, {pipeline_mode = #tpu.pipeline_mode<synchronous>, transform_indices = @transform_2, window_bounds = array<i64: 8, 16>}, {pipeline_mode = #tpu.pipeline_mode<synchronous>, transform_indices = @transform_3, window_bounds = array<i64: 1, 128>}, {pipeline_mode = #tpu.pipeline_mode<synchronous>, transform_indices = @transform_4, window_bounds = array<i64: 1, 128>}, {pipeline_mode = #tpu.pipeline_mode<synchronous>, transform_indices = @transform_5, window_bounds = array<i64: 8, 1>}, {pipeline_mode = #tpu.pipeline_mode<synchronous>, transform_indices = @transform_6, window_bounds = array<i64: 2, 8, 128>}]} {
    %c2_i32 = arith.constant 2 : i32
    %0 = arith.muli %arg0, %c2_i32 : i32
    %c0 = arith.constant 0 : index
    %c0_0 = arith.constant 0 : index
    %1 = vector.load %arg3[%c0, %c0_0] : memref<8x16xf32, #tpu.memory_space<vmem>>, vector<8x16xf32>
    %c0_1 = arith.constant 0 : index
    %c0_2 = arith.constant 0 : index
    %2 = vector.load %arg1[%c0_1, %c0_2] : memref<16x256xf32, #tpu.memory_space<vmem>>, vector<16x256xf32>
    %cst = arith.constant dense<0.000000e+00> : vector<8x256xf32>
    %3 = tpu.matmul %1, %2, %cst {dimension_numbers = #tpu.dot_dimension_numbers<[1], [0], [0], [1], [0, 0, 1, 1], [], []>} : vector<8x16xf32>, vector<16x256xf32>, vector<8x256xf32> -> vector<8x256xf32>
    %4 = vector.extract_strided_slice %3 {offsets = [0, 0], sizes = [8, 128], strides = [1, 1]} : vector<8x256xf32> to vector<8x128xf32>
    %c0_3 = arith.constant 0 : index
    %c0_4 = arith.constant 0 : index
    %c0_5 = arith.constant 0 : index
    %5 = vector.load %arg2[%c0_3, %c0_4, %c0_5] : memref<2x128x128xf32, #tpu.memory_space<vmem>>, vector<1x128x128xf32>
    %6 = vector.shape_cast %5 : vector<1x128x128xf32> to vector<128x128xf32>
    %cst_6 = arith.constant dense<0.000000e+00> : vector<8x128xf32>
    %7 = tpu.matmul %4, %6, %cst_6 {dimension_numbers = #tpu.dot_dimension_numbers<[1], [0], [0], [1], [0, 0, 1, 1], [], []>} : vector<8x128xf32>, vector<128x128xf32>, vector<8x128xf32> -> vector<8x128xf32>
    %c0_i32 = arith.constant 0 : i32
    %8 = arith.addi %0, %c0_i32 : i32
    %9 = arith.index_cast %8 : i32 to index
    %c0_7 = arith.constant 0 : index
    %c0_8 = arith.constant 0 : index
    %10 = vector.load %arg7[%9, %c0_7, %c0_8] : memref<2x8x128xf32, #tpu.memory_space<vmem>>, vector<1x8x128xf32>
    %11 = vector.shape_cast %10 : vector<1x8x128xf32> to vector<8x128xf32>
    %12 = vector.shape_cast %7 : vector<8x128xf32> to vector<1x8x128xf32>
    tpu.vector_store %arg7[%9, %c0_7, %c0_8], %12 {strides = array<i32>} : memref<2x8x128xf32, #tpu.memory_space<vmem>>, vector<1x8x128xf32>,
    %13 = vector.extract_strided_slice %3 {offsets = [0, 128], sizes = [8, 128], strides = [1, 1]} : vector<8x256xf32> to vector<8x128xf32>
    %c1 = arith.constant 1 : index
    %c0_9 = arith.constant 0 : index
    %c0_10 = arith.constant 0 : index
    %14 = vector.load %arg2[%c1, %c0_9, %c0_10] : memref<2x128x128xf32, #tpu.memory_space<vmem>>, vector<1x128x128xf32>
    %15 = vector.shape_cast %14 : vector<1x128x128xf32> to vector<128x128xf32>
    %cst_11 = arith.constant dense<0.000000e+00> : vector<8x128xf32>
    %16 = tpu.matmul %13, %15, %cst_11 {dimension_numbers = #tpu.dot_dimension_numbers<[1], [0], [0], [1], [0, 0, 1, 1], [], []>} : vector<8x128xf32>, vector<128x128xf32>, vector<8x128xf32> -> vector<8x128xf32>
    %c1_i32 = arith.constant 1 : i32
    %17 = arith.addi %0, %c1_i32 : i32
    %18 = arith.index_cast %17 : i32 to index
    %c0_12 = arith.constant 0 : index
    %c0_13 = arith.constant 0 : index
    %19 = vector.load %arg7[%18, %c0_12, %c0_13] : memref<2x8x128xf32, #tpu.memory_space<vmem>>, vector<1x8x128xf32>
    %20 = vector.shape_cast %19 : vector<1x8x128xf32> to vector<8x128xf32>
    %21 = vector.shape_cast %16 : vector<8x128xf32> to vector<1x8x128xf32>
    tpu.vector_store %arg7[%18, %c0_12, %c0_13], %21 {strides = array<i32>} : memref<2x8x128xf32, #tpu.memory_space<vmem>>, vector<1x8x128xf32>,
    %c0_i32_14 = arith.constant 0 : i32
    %22 = arith.cmpi eq, %arg0, %c0_i32_14 : i32
    %23 = arith.extui %22 : i1 to i32
    %c0_i32_15 = arith.constant 0 : i32
    %24 = arith.cmpi ne, %23, %c0_i32_15 : i32
    scf.if %24 {
      %c0_16 = arith.constant 0 : index
      %c0_17 = arith.constant 0 : index
      %c0_18 = arith.constant 0 : index
      %25 = vector.load %arg7[%c0_16, %c0_17, %c0_18] : memref<2x8x128xf32, #tpu.memory_space<vmem>>, vector<2x8x128xf32>
      %cst_19 = arith.constant dense<0.000000e+00> : vector<8x128xf32>
      %26 = vector.multi_reduction <add>, %25, %cst_19 [0] : vector<2x8x128xf32> to vector<8x128xf32>
      %cst_20 = arith.constant dense<0.000000e+00> : vector<128xf32>
      %27 = vector.multi_reduction <add>, %26, %cst_20 [0] : vector<8x128xf32> to vector<128xf32>
      %28 = vector.shape_cast %27 : vector<128xf32> to vector<1x128xf32>
      %cst_21 = arith.constant 6.250000e-02 : f32
      %29 = vector.broadcast %cst_21 : f32 to vector<1x128xf32>
      %30 = arith.mulf %28, %29 : vector<1x128xf32>
      %31 = vector.shape_cast %30 : vector<1x128xf32> to vector<1x1x128xf32>
      %32 = vector.broadcast %31 : vector<1x1x128xf32> to vector<2x8x128xf32>
      %33 = arith.subf %25, %32 : vector<2x8x128xf32>
      %34 = arith.mulf %33, %33 : vector<2x8x128xf32>
      %cst_22 = arith.constant dense<0.000000e+00> : vector<8x128xf32>
      %35 = vector.multi_reduction <add>, %34, %cst_22 [0] : vector<2x8x128xf32> to vector<8x128xf32>
      %cst_23 = arith.constant dense<0.000000e+00> : vector<128xf32>
      %36 = vector.multi_reduction <add>, %35, %cst_23 [0] : vector<8x128xf32> to vector<128xf32>
      %37 = vector.shape_cast %36 : vector<128xf32> to vector<1x128xf32>
      %cst_24 = arith.constant 6.250000e-02 : f32
      %38 = vector.broadcast %cst_24 : f32 to vector<1x128xf32>
      %39 = arith.mulf %37, %38 : vector<1x128xf32>
      %c0_25 = arith.constant 0 : index
      %c0_26 = arith.constant 0 : index
      %40 = vector.load %arg4[%c0_25, %c0_26] : memref<1x128xf32, #tpu.memory_space<vmem>>, vector<1x128xf32>
      %cst_27 = arith.constant 9.99999974E-6 : f32
      %41 = vector.broadcast %cst_27 : f32 to vector<1x128xf32>
      %42 = arith.addf %39, %41 : vector<1x128xf32>
      %43 = math.rsqrt %42 : vector<1x128xf32>
      %44 = arith.mulf %40, %43 : vector<1x128xf32>
      %c0_28 = arith.constant 0 : index
      %c0_29 = arith.constant 0 : index
      %45 = vector.load %arg5[%c0_28, %c0_29] : memref<1x128xf32, #tpu.memory_space<vmem>>, vector<1x128xf32>
      %46 = arith.mulf %30, %44 : vector<1x128xf32>
      %47 = arith.subf %45, %46 : vector<1x128xf32>
      %48 = vector.shape_cast %44 : vector<1x128xf32> to vector<1x1x128xf32>
      %49 = vector.broadcast %48 : vector<1x1x128xf32> to vector<2x8x128xf32>
      %50 = arith.mulf %25, %49 : vector<2x8x128xf32>
      %51 = vector.shape_cast %47 : vector<1x128xf32> to vector<1x1x128xf32>
      %52 = vector.broadcast %51 : vector<1x1x128xf32> to vector<2x8x128xf32>
      %53 = arith.addf %50, %52 : vector<2x8x128xf32>
      %c0_30 = arith.constant 0 : index
      %c0_31 = arith.constant 0 : index
      %54 = vector.load %arg6[%c0_30, %c0_31] : memref<8x1xf32, #tpu.memory_space<vmem>>, vector<8x1xf32>
      %55 = vector.shape_cast %54 : vector<8x1xf32> to vector<1x8x1xf32>
      %56 = vector.broadcast %55 : vector<1x8x1xf32> to vector<2x8x128xf32>
      %57 = arith.addf %53, %56 : vector<2x8x128xf32>
      %c0_32 = arith.constant 0 : index
      %c0_33 = arith.constant 0 : index
      %c0_34 = arith.constant 0 : index
      %58 = vector.load %arg7[%c0_32, %c0_33, %c0_34] : memref<2x8x128xf32, #tpu.memory_space<vmem>>, vector<2x8x128xf32>
      tpu.vector_store %arg7[%c0_32, %c0_33, %c0_34], %57 {strides = array<i32>} : memref<2x8x128xf32, #tpu.memory_space<vmem>>, vector<2x8x128xf32>,
    } else {
    }
    return
  }
  func.func @transform_0(%arg0: i32) -> (i32, i32) {
    %c0_i32 = arith.constant 0 : i32
    %c0_i32_0 = arith.constant 0 : i32
    return %c0_i32, %arg0 : i32, i32
  }
  func.func @transform_1(%arg0: i32) -> (i32, i32, i32) {
    %c0_i32 = arith.constant 0 : i32
    %c0_i32_0 = arith.constant 0 : i32
    %c0_i32_1 = arith.constant 0 : i32
    return %arg0, %c0_i32, %c0_i32_0 : i32, i32, i32
  }
  func.func @transform_2(%arg0: i32) -> (i32, i32) {
    %c0_i32 = arith.constant 0 : i32
    %c0_i32_0 = arith.constant 0 : i32
    %c0_i32_1 = arith.constant 0 : i32
    return %c0_i32, %c0_i32_0 : i32, i32
  }
  func.func @transform_3(%arg0: i32) -> (i32, i32) {
    %c0_i32 = arith.constant 0 : i32
    %c0_i32_0 = arith.constant 0 : i32
    %c0_i32_1 = arith.constant 0 : i32
    return %c0_i32, %c0_i32_0 : i32, i32
  }
  func.func @transform_4(%arg0: i32) -> (i32, i32) {
    %c0_i32 = arith.constant 0 : i32
    %c0_i32_0 = arith.constant 0 : i32
    %c0_i32_1 = arith.constant 0 : i32
    return %c0_i32, %c0_i32_0 : i32, i32
  }
  func.func @transform_5(%arg0: i32) -> (i32, i32) {
    %c0_i32 = arith.constant 0 : i32
    %c0_i32_0 = arith.constant 0 : i32
    %c0_i32_1 = arith.constant 0 : i32
    return %c0_i32, %c0_i32_0 : i32, i32
  }
  func.func @transform_6(%arg0: i32) -> (i32, i32, i32) {
    %c0_i32 = arith.constant 0 : i32
    %c0_i32_0 = arith.constant 0 : i32
    %c0_i32_1 = arith.constant 0 : i32
    %c0_i32_2 = arith.constant 0 : i32
    return %c0_i32, %c0_i32_0, %c0_i32_1 : i32, i32, i32
  }
}

</mosaic_0001>

<llo_original>
// kernel: tpu_custom_call.1
$region0: #{tpu_custom_call.1}
  #allocation0 [shape = 'u32[]', space=smem, size = 0x4, offset = 0x4, fixed_abs, tag = 'smem constant byte address 0x4 - core index']
  #allocation1 [shape = 'u32[144,128]{1,0:T(1,128)}', space=vmem, size = 0x12000, scoped, tag = 'internal scratch']
  %s0 = inlined_call_operand.hbm [shape: f32[16,256], index: 0, kind: input, shape index: {}]
  %s1 = inlined_call_operand.hbm [shape: f32[2,128,128], index: 1, kind: input, shape index: {}]
  %s2 = inlined_call_operand.vmem [shape: f32[8,16], index: 2, kind: input, shape index: {}]
  %s3 = inlined_call_operand.vmem [shape: f32[1,128], index: 3, kind: input, shape index: {}]
  %s4 = inlined_call_operand.vmem [shape: f32[1,128], index: 4, kind: input, shape index: {}]
  %s5 = inlined_call_operand.vmem [shape: f32[8,1], index: 5, kind: input, shape index: {}]
  %s6 = inlined_call_operand.hbm [shape: f32[2,8,128], index: 6, kind: output, shape index: {}]
  %s7 = sld [smem:[#allocation0]]
  $region46: #{tpu_custom_call.1} parent=0
    _
  %s9 = ssub.s32 1, %s7
  %s10 = scalar_select 0, %s9, %s7
  $region1: #{tpu_custom_call.1} parent=0
    #allocation2 [shape = 'u8[16384]{0}', space=vmem, size = 0x4000, scoped, tag = 'input window, operand 0, single buffered']
    #allocation3 [shape = 's32[1]{0}', space=sflag, size = 0x4, scoped, tag = 'scoped memory for tpu_custom_call.1']
    #allocation4 [shape = 's32[1]{0}', space=sflag, size = 0x4, scoped, tag = 'scoped memory for tpu_custom_call.1']
    #allocation5 [shape = 'u8[131072]{0}', space=vmem, size = 0x20000, scoped, tag = 'input window, operand 1, single buffered']
    #allocation6 [shape = 's32[1]{0}', space=sflag, size = 0x4, scoped, tag = 'scoped memory for tpu_custom_call.1']
    #allocation7 [shape = 'u8[8192]{0}', space=vmem, size = 0x2000, scoped, tag = 'output window, operand 0, single buffered']
    %11 = vsyncpa [#allocation3], 0
    %12 = vsyncpa [#allocation6], 0
    %13 = vsyncpa [#allocation4], 0
    // Predicated region
    $region2: #{tpu_custom_call.1} parent=1 // pred_check
      _
    $region3: #{tpu_custom_call.1} parent=1 // pred_check_branch
      %15 = sbr.rel (0) target = $region5
    $region4: #{tpu_custom_call.1} parent=1 // pred_region
      %s17 = ssub.s32 512, 512
      %18 = vsyncadd [#allocation3], %s17
      %s19 = sshll.u32 [#allocation2], 4
      %s20 = int_to_ptr.vmem [resolvable:$true] %s19
      %25 = dma.hbm_to_vmem [thread:$0]  %s0, 512, %s20, [#allocation3], 256, 256, 16
    $region5: #{tpu_custom_call.1} parent=1 // pred_fallthru
      _
    // Predicated region
    $region6: #{tpu_custom_call.1} parent=1 // pred_check
      _
    $region7: #{tpu_custom_call.1} parent=1 // pred_check_branch
      %27 = sbr.rel (0) target = $region9
    $region8: #{tpu_custom_call.1} parent=1 // pred_region
      %s29 = ssub.s32 4096, 4096
      %30 = vsyncadd [#allocation6], %s29
      %s31 = sshll.u32 [#allocation5], 4
      %s32 = int_to_ptr.vmem [resolvable:$true] %s31
      %37 = dma.hbm_to_vmem [thread:$0]  %s1, 4096, %s32, [#allocation6], 128, 128, 8
    $region9: #{tpu_custom_call.1} parent=1 // pred_fallthru
      _
    // Predicated region
    $region10: #{tpu_custom_call.1} parent=1 // pred_check
      _
    $region11: #{tpu_custom_call.1} parent=1 // pred_check_branch
      %39 = sbr.rel (0) target = $region13
    $region12: #{tpu_custom_call.1} parent=1 // pred_region
      _
    $region13: #{tpu_custom_call.1} parent=1 // pred_fallthru
      _
    // Predicated region
    $region14: #{tpu_custom_call.1} parent=1 // pred_check
      _
    $region15: #{tpu_custom_call.1} parent=1 // pred_check_branch
      %41 = sbr.rel (0) target = $region17
    $region16: #{tpu_custom_call.1} parent=1 // pred_region
      _
    $region17: #{tpu_custom_call.1} parent=1 // pred_fallthru
      _
    // Predicated region
    $region18: #{tpu_custom_call.1} parent=1 // pred_check
      _
    $region19: #{tpu_custom_call.1} parent=1 // pred_check_branch
      %43 = sbr.rel (0) target = $region21
    $region20: #{tpu_custom_call.1} parent=1 // pred_region
      _
    $region21: #{tpu_custom_call.1} parent=1 // pred_fallthru
      _
    // Predicated region
    $region22: #{tpu_custom_call.1} parent=1 // pred_check
      _
    $region23: #{tpu_custom_call.1} parent=1 // pred_check_branch
      %45 = sbr.rel (0) target = $region25
    $region24: #{tpu_custom_call.1} parent=1 // pred_region
      _
    $region25: #{tpu_custom_call.1} parent=1 // pred_fallthru
      _
    // Predicated region
    $region26: #{tpu_custom_call.1} parent=1 // pred_check
      _
    $region27: #{tpu_custom_call.1} parent=1 // pred_check_branch
      %47 = sbr.rel (0) target = $region29
    $region28: #{tpu_custom_call.1} parent=1 // pred_region
      %48 = dma.done [#allocation3], 512
    $region29: #{tpu_custom_call.1} parent=1 // pred_fallthru
      _
    // Predicated region
    $region30: #{tpu_custom_call.1} parent=1 // pred_check
      _
    $region31: #{tpu_custom_call.1} parent=1 // pred_check_branch
      %50 = sbr.rel (0) target = $region33
    $region32: #{tpu_custom_call.1} parent=1 // pred_region
      %51 = dma.done [#allocation6], 4096
    $region33: #{tpu_custom_call.1} parent=1 // pred_fallthru
      _
    %s52 = smul.u32 0, 2
    %v53 = vld [vmem:[%s2] sm:$0xff]
    %v54 = vld [vmem:[#allocation2] sm:$0xff]
    %v55 = vld [vmem:[#allocation2 + $0x8] sm:$0xff]
    %v56 = vld [vmem:[#allocation2 + $0x10] sm:$0xff]
    %v57 = vld [vmem:[#allocation2 + $0x18] sm:$0xff]
    %vm58 = vcmask 130048
    %v60 = vsel %vm58, %v53, 0
    %62 = vmatprep.subr.mxu0 %v55
    %63 = vmatpush1.msra.mxu0 %v54
    %64 = vmatprep.subr.mxu0 %v57
    %65 = vmatpush1.msra.mxu0 %v56
    %66 = vmatprep.subr.mxu0 0.0
    %67 = vmatpush1.msra.mxu0 0.0
    %68 = vmatprep.subr.mxu0 0.0
    %69 = vmatpush1.msra.mxu0 0.0
    %70 = vmatprep.subr.mxu0 0.0
    %71 = vmatpush1.msra.mxu0 0.0
    %72 = vmatprep.subr.mxu0 0.0
    %73 = vmatpush1.msra.mxu0 0.0
    %74 = vmatprep.subr.mxu0 0.0
    %75 = vmatpush1.msra.mxu0 0.0
    %76 = vmatprep.subr.mxu0 0.0
    %77 = vmatpush1.msra.mxu0 0.0
    %78 = vmatprep.subr.mxu0 0.0
    %79 = vmatpush1.msra.mxu0 0.0
    %80 = vmatprep.subr.mxu0 0.0
    %81 = vmatpush1.msra.mxu0 0.0
    %82 = vmatprep.subr.mxu0 0.0
    %83 = vmatpush1.msra.mxu0 0.0
    %84 = vmatprep.subr.mxu0 0.0
    %85 = vmatpush1.msra.mxu0 0.0
    %86 = vmatprep.subr.mxu0 0.0
    %87 = vmatpush1.msra.mxu0 0.0
    %88 = vmatprep.subr.mxu0 0.0
    %89 = vmatpush1.msra.mxu0 0.0
    %90 = vmatprep.subr.mxu0 0.0
    %91 = vmatpush1.msra.mxu0 0.0
    %92 = vmatprep.subr.mxu0 0.0
    %93 = vmatpush1.msra.mxu0 0.0
    %94 = vmatprep.subr.mxu0 0.0
    %95 = vmatpush1.msra.mxu0 0.0
    %96 = vmatprep.subr.mxu0 0.0
    %97 = vmatpush1.msra.mxu0 0.0
    %98 = vmatprep.subr.mxu0 0.0
    %99 = vmatpush1.msra.mxu0 0.0
    %100 = vmatprep.subr.mxu0 0.0
    %101 = vmatpush1.msra.mxu0 0.0
    %102 = vmatprep.subr.mxu0 0.0
    %103 = vmatpush1.msra.mxu0 0.0
    %104 = vmatprep.subr.mxu0 0.0
    %105 = vmatpush1.msra.mxu0 0.0
    %106 = vmatprep.subr.mxu0 0.0
    %107 = vmatpush1.msra.mxu0 0.0
    %108 = vmatprep.subr.mxu0 0.0
    %109 = vmatpush1.msra.mxu0 0.0
    %110 = vmatprep.subr.mxu0 0.0
    %111 = vmatpush1.msra.mxu0 0.0
    %112 = vmatprep.subr.mxu0 0.0
    %113 = vmatpush1.msra.mxu0 0.0
    %114 = vmatprep.subr.mxu0 0.0
    %115 = vmatpush1.msra.mxu0 0.0
    %116 = vmatprep.subr.mxu0 0.0
    %117 = vmatpush1.msra.mxu0 0.0
    %118 = vmatprep.subr.mxu0 0.0
    %119 = vmatpush1.msra.mxu0 0.0
    %120 = vmatprep.subr.mxu0 0.0
    %121 = vmatpush1.msra.mxu0 0.0
    %122 = vmatprep.subr.mxu0 0.0
    %123 = vmatpush1.msra.mxu0 0.0
    %124 = vmatprep.subr.mxu0 0.0
    %125 = vmatpush1.msra.mxu0 0.0
    %126 = vmatprep.mubr.f32.mxu0 0.0
    %127 = vmatmul.mubr.f32.gmra.mrb[0].mxu0 %v60
    %v128 = vpop.f32.mrb[0].mxu0
    %v129 = vadd.f32 0.0, %v128
    %v130 = vpop.f32.mrb[0].mxu0
    %v131 = vadd.f32 0.0, %v130
    %132 = vdwg.mxu0
    %v133 = vld [vmem:[#allocation5] sm:$0xff]
    %v134 = vld [vmem:[#allocation5 + $0x8] sm:$0xff]
    %v135 = vld [vmem:[#allocation5 + $0x10] sm:$0xff]
    %v136 = vld [vmem:[#allocation5 + $0x18] sm:$0xff]
    %v137 = vld [vmem:[#allocation5 + $0x20] sm:$0xff]
    %v138 = vld [vmem:[#allocation5 + $0x28] sm:$0xff]
    %v139 = vld [vmem:[#allocation5 + $0x30] sm:$0xff]
    %v140 = vld [vmem:[#allocation5 + $0x38] sm:$0xff]
    %v141 = vld [vmem:[#allocation5 + $0x40] sm:$0xff]
    %v142 = vld [vmem:[#allocation5 + $0x48] sm:$0xff]
    %v143 = vld [vmem:[#allocation5 + $0x50] sm:$0xff]
    %v144 = vld [vmem:[#allocation5 + $0x58] sm:$0xff]
    %v145 = vld [vmem:[#allocation5 + $0x60] sm:$0xff]
    %v146 = vld [vmem:[#allocation5 + $0x68] sm:$0xff]
    %v147 = vld [vmem:[#allocation5 + $0x70] sm:$0xff]
    %v148 = vld [vmem:[#allocation5 + $0x78] sm:$0xff]
    %149 = vmatprep.subr.mxu0 0.0
    %150 = vmatpush1.msra.mxu0 %v133
    %151 = vmatprep.subr.mxu0 0.0
    %152 = vmatpush1.msra.mxu0 %v134
    %153 = vmatprep.subr.mxu0 0.0
    %154 = vmatpush1.msra.mxu0 %v135
    %155 = vmatprep.subr.mxu0 0.0
    %156 = vmatpush1.msra.mxu0 %v136
    %157 = vmatprep.subr.mxu0 0.0
    %158 = vmatpush1.msra.mxu0 %v137
    %159 = vmatprep.subr.mxu0 0.0
    %160 = vmatpush1.msra.mxu0 %v138
    %161 = vmatprep.subr.mxu0 0.0
    %162 = vmatpush1.msra.mxu0 %v139
    %163 = vmatprep.subr.mxu0 0.0
    %164 = vmatpush1.msra.mxu0 %v140
    %165 = vmatprep.subr.mxu0 0.0
    %166 = vmatpush1.msra.mxu0 %v141
    %167 = vmatprep.subr.mxu0 0.0
    %168 = vmatpush1.msra.mxu0 %v142
    %169 = vmatprep.subr.mxu0 0.0
    %170 = vmatpush1.msra.mxu0 %v143
    %171 = vmatprep.subr.mxu0 0.0
    %172 = vmatpush1.msra.mxu0 %v144
    %173 = vmatprep.subr.mxu0 0.0
    %174 = vmatpush1.msra.mxu0 %v145
    %175 = vmatprep.subr.mxu0 0.0
    %176 = vmatpush1.msra.mxu0 %v146
    %177 = vmatprep.subr.mxu0 0.0
    %178 = vmatpush1.msra.mxu0 %v147
    %179 = vmatprep.subr.mxu0 0.0
    %180 = vmatpush1.msra.mxu0 %v148
    %181 = vmatprep.subr.mxu0 0.0
    %182 = vmatpush1.msra.mxu0 0.0
    %183 = vmatprep.subr.mxu0 0.0
    %184 = vmatpush1.msra.mxu0 0.0
    %185 = vmatprep.subr.mxu0 0.0
    %186 = vmatpush1.msra.mxu0 0.0
    %187 = vmatprep.subr.mxu0 0.0
    %188 = vmatpush1.msra.mxu0 0.0
    %189 = vmatprep.subr.mxu0 0.0
    %190 = vmatpush1.msra.mxu0 0.0
    %191 = vmatprep.subr.mxu0 0.0
    %192 = vmatpush1.msra.mxu0 0.0
    %193 = vmatprep.subr.mxu0 0.0
    %194 = vmatpush1.msra.mxu0 0.0
    %195 = vmatprep.subr.mxu0 0.0
    %196 = vmatpush1.msra.mxu0 0.0
    %197 = vmatprep.subr.mxu0 0.0
    %198 = vmatpush1.msra.mxu0 0.0
    %199 = vmatprep.subr.mxu0 0.0
    %200 = vmatpush1.msra.mxu0 0.0
    %201 = vmatprep.subr.mxu0 0.0
    %202 = vmatpush1.msra.mxu0 0.0
    %203 = vmatprep.subr.mxu0 0.0
    %204 = vmatpush1.msra.mxu0 0.0
    %205 = vmatprep.subr.mxu0 0.0
    %206 = vmatpush1.msra.mxu0 0.0
    %207 = vmatprep.subr.mxu0 0.0
    %208 = vmatpush1.msra.mxu0 0.0
    %209 = vmatprep.subr.mxu0 0.0
    %210 = vmatpush1.msra.mxu0 0.0
    %211 = vmatprep.subr.mxu0 0.0
    %212 = vmatpush1.msra.mxu0 0.0
    %213 = vmatprep.mubr.f32.mxu0 0.0
    %214 = vmatmul.mubr.f32.gmra.mrb[0].mxu0 %v129
    %v215 = vpop.f32.mrb[0].mxu0
    %v216 = vadd.f32 0.0, %v215
    %v217 = vpop.f32.mrb[0].mxu0
    %218 = vdwg.mxu0
    %s219 = smul.u32 %s52, 8
    %s220 = scalar_lea.vmem [#allocation7], %s219
    %221 = vst [vmem:[%s220] sm:$0xff] %v216
    %s222 = scalar_lea.vmem [#allocation5], 128
    %v223 = vld [vmem:[%s222] sm:$0xff]
    %v224 = vld [vmem:[%s222 + $0x8] sm:$0xff]
    %v225 = vld [vmem:[%s222 + $0x10] sm:$0xff]
    %v226 = vld [vmem:[%s222 + $0x18] sm:$0xff]
    %v227 = vld [vmem:[%s222 + $0x20] sm:$0xff]
    %v228 = vld [vmem:[%s222 + $0x28] sm:$0xff]
    %v229 = vld [vmem:[%s222 + $0x30] sm:$0xff]
    %v230 = vld [vmem:[%s222 + $0x38] sm:$0xff]
    %v231 = vld [vmem:[%s222 + $0x40] sm:$0xff]
    %v232 = vld [vmem:[%s222 + $0x48] sm:$0xff]
    %v233 = vld [vmem:[%s222 + $0x50] sm:$0xff]
    %v234 = vld [vmem:[%s222 + $0x58] sm:$0xff]
    %v235 = vld [vmem:[%s222 + $0x60] sm:$0xff]
    %v236 = vld [vmem:[%s222 + $0x68] sm:$0xff]
    %v237 = vld [vmem:[%s222 + $0x70] sm:$0xff]
    %v238 = vld [vmem:[%s222 + $0x78] sm:$0xff]
    %239 = vmatprep.subr.mxu0 0.0
    %240 = vmatpush1.msra.mxu0 %v223
    %241 = vmatprep.subr.mxu0 0.0
    %242 = vmatpush1.msra.mxu0 %v224
    %243 = vmatprep.subr.mxu0 0.0
    %244 = vmatpush1.msra.mxu0 %v225
    %245 = vmatprep.subr.mxu0 0.0
    %246 = vmatpush1.msra.mxu0 %v226
    %247 = vmatprep.subr.mxu0 0.0
    %248 = vmatpush1.msra.mxu0 %v227
    %249 = vmatprep.subr.mxu0 0.0
    %250 = vmatpush1.msra.mxu0 %v228
    %251 = vmatprep.subr.mxu0 0.0
    %252 = vmatpush1.msra.mxu0 %v229
    %253 = vmatprep.subr.mxu0 0.0
    %254 = vmatpush1.msra.mxu0 %v230
    %255 = vmatprep.subr.mxu0 0.0
    %256 = vmatpush1.msra.mxu0 %v231
    %257 = vmatprep.subr.mxu0 0.0
    %258 = vmatpush1.msra.mxu0 %v232
    %259 = vmatprep.subr.mxu0 0.0
    %260 = vmatpush1.msra.mxu0 %v233
    %261 = vmatprep.subr.mxu0 0.0
    %262 = vmatpush1.msra.mxu0 %v234
    %263 = vmatprep.subr.mxu0 0.0
    %264 = vmatpush1.msra.mxu0 %v235
    %265 = vmatprep.subr.mxu0 0.0
    %266 = vmatpush1.msra.mxu0 %v236
    %267 = vmatprep.subr.mxu0 0.0
    %268 = vmatpush1.msra.mxu0 %v237
    %269 = vmatprep.subr.mxu0 0.0
    %270 = vmatpush1.msra.mxu0 %v238
    %271 = vmatprep.subr.mxu0 0.0
    %272 = vmatpush1.msra.mxu0 0.0
    %273 = vmatprep.subr.mxu0 0.0
    %274 = vmatpush1.msra.mxu0 0.0
    %275 = vmatprep.subr.mxu0 0.0
    %276 = vmatpush1.msra.mxu0 0.0
    %277 = vmatprep.subr.mxu0 0.0
    %278 = vmatpush1.msra.mxu0 0.0
    %279 = vmatprep.subr.mxu0 0.0
    %280 = vmatpush1.msra.mxu0 0.0
    %281 = vmatprep.subr.mxu0 0.0
    %282 = vmatpush1.msra.mxu0 0.0
    %283 = vmatprep.subr.mxu0 0.0
    %284 = vmatpush1.msra.mxu0 0.0
    %285 = vmatprep.subr.mxu0 0.0
    %286 = vmatpush1.msra.mxu0 0.0
    %287 = vmatprep.subr.mxu0 0.0
    %288 = vmatpush1.msra.mxu0 0.0
    %289 = vmatprep.subr.mxu0 0.0
    %290 = vmatpush1.msra.mxu0 0.0
    %291 = vmatprep.subr.mxu0 0.0
    %292 = vmatpush1.msra.mxu0 0.0
    %293 = vmatprep.subr.mxu0 0.0
    %294 = vmatpush1.msra.mxu0 0.0
    %295 = vmatprep.subr.mxu0 0.0
    %296 = vmatpush1.msra.mxu0 0.0
    %297 = vmatprep.subr.mxu0 0.0
    %298 = vmatpush1.msra.mxu0 0.0
    %299 = vmatprep.subr.mxu0 0.0
    %300 = vmatpush1.msra.mxu0 0.0
    %301 = vmatprep.subr.mxu0 0.0
    %302 = vmatpush1.msra.mxu0 0.0
    %303 = vmatprep.mubr.f32.mxu0 0.0
    %304 = vmatmul.mubr.f32.gmra.mrb[0].mxu0 %v131
    %v305 = vpop.f32.mrb[0].mxu0
    %v306 = vadd.f32 0.0, %v305
    %v307 = vpop.f32.mrb[0].mxu0
    %308 = vdwg.mxu0
    %s309 = sadd.s32 %s52, 1
    %s310 = smul.u32 %s309, 8
    %s311 = scalar_lea.vmem [#allocation7], %s310
    %312 = vst [vmem:[%s311] sm:$0xff] %v306
    %p313 = scmp.eq.s32.totalorder 0, 0
    // Predicated region
    $region34: #{tpu_custom_call.1} parent=1 // pred_check
      %p314 = pneg %p313
    $region35: #{tpu_custom_call.1} parent=1 // pred_check_branch
      %316 = sbr.rel (%p314) target = $region37
    $region36: #{tpu_custom_call.1} parent=1 // pred_region
      %v317 = vld [vmem:[#allocation7] sm:$0xff]
      %v318 = vld [vmem:[#allocation7 + $0x8] sm:$0xff]
      %v319 = vadd.f32 %v317, %v318
      %v320 = vrot.slane %v319, 4
      %v321 = vadd.f32 %v319, %v320
      %v322 = vrot.slane %v321, 2
      %v323 = vadd.f32 %v321, %v322
      %v324 = vrot.slane %v323, 1
      %v325 = vadd.f32 %v323, %v324
      %v326 = vmul.f32 %v325, 0.0625
      %v327 = vsub.f32 %v317, %v326
      %v328 = vsub.f32 %v318, %v326
      %v329 = vmul.f32 %v327, %v327
      %v330 = vmul.f32 %v328, %v328
      %v331 = vadd.f32 %v329, %v330
      %v332 = vrot.slane %v331, 4
      %v333 = vadd.f32 %v331, %v332
      %v334 = vrot.slane %v333, 2
      %v335 = vadd.f32 %v333, %v334
      %v336 = vrot.slane %v335, 1
      %v337 = vadd.f32 %v335, %v336
      %v338 = vmul.f32 %v337, 0.0625
      %v339 = vld [vmem:[%s3] sm:$0x1]
      %v340 = vadd.f32 %v338, 1e-05
      %v341 = vrsqrt.pop %v340
      %v342 = vmul.f32 %v339, %v341
      %v343 = vld [vmem:[%s4] sm:$0x1]
      %v344 = vmul.f32 %v326, %v342
      %v345 = vsub.f32 %v343, %v344
      %v347 = vlaneseq
      %v348 = vshrl.u32 %v347, 7
      %v349 = vsub.s32 0, %v348
      %v350 = vrot.slane %v342, %v349
      %v352 = vmul.f32 %v317, %v350
      %v353 = vmul.f32 %v318, %v350
      %v355 = vlaneseq
      %v356 = vshrl.u32 %v355, 7
      %v357 = vsub.s32 0, %v356
      %v358 = vrot.slane %v345, %v357
      %v360 = vadd.f32 %v352, %v358
      %v361 = vadd.f32 %v353, %v358
      %v362 = vld [vmem:[%s5] sm:$0xff]
      %364 = vset.pattern.permute.xlu0 0
      %365 = vperm.xlu0 %364, %v362
      %v366 = vpop.permute.xlu0 %365
      %v368 = vadd.f32 %v360, %v366
      %v369 = vadd.f32 %v361, %v366
      %370 = vst [vmem:[#allocation7] sm:$0xff] %v368
      %371 = vst [vmem:[#allocation7 + $0x8] sm:$0xff] %v369
    $region37: #{tpu_custom_call.1} parent=1 // pred_fallthru
      _
    // Predicated region
    $region38: #{tpu_custom_call.1} parent=1 // pred_check
      _
    $region39: #{tpu_custom_call.1} parent=1 // pred_check_branch
      %373 = sbr.rel (0) target = $region41
    $region40: #{tpu_custom_call.1} parent=1 // pred_region
      %s375 = ssub.s32 256, 256
      %376 = vsyncadd [#allocation4], %s375
      %s377 = sshll.u32 [#allocation7], 4
      %s378 = int_to_ptr.vmem [resolvable:$true] %s377
      %383 = dma.vmem_to_hbm [thread:$0]  %s378, 256, %s6, [#allocation4], 128, 128, 8
    $region41: #{tpu_custom_call.1} parent=1 // pred_fallthru
      _
    // Predicated region
    $region42: #{tpu_custom_call.1} parent=1 // pred_check
      _
    $region43: #{tpu_custom_call.1} parent=1 // pred_check_branch
      %385 = sbr.rel (0) target = $region45
    $region44: #{tpu_custom_call.1} parent=1 // pred_region
      %386 = dma.done [#allocation4], 256
    $region45: #{tpu_custom_call.1} parent=1 // pred_fallthru
      _
    %387 = vsyncpa [#allocation3], 1
    %388 = vsyncpa [#allocation6], 1
    %389 = vsyncpa [#allocation4], 1

</llo_original>
